<compile_context>
chip_gen: v5e
topology: v5e:2x2
jax: 0.10.0
libtpu: 0.0.40
codegen_flags: <defaults>
</compile_context>

<pallas_src>
import jax
import jax.numpy as jnp
from jax.experimental import pallas as pl
from jax.experimental.pallas import tpu as pltpu


def _item_context_kernel(x_ref, w_ref, gamma_ref, beta_ref, o_ref):
    # x_ref: (tb, K); w_ref: (K, D); gamma/beta: (1, D); o_ref: (tb, D) f32.
    # MXU matmul, always accumulated in f32 regardless of the input dtype.
    y = jnp.dot(x_ref[...], w_ref[...], preferred_element_type=jnp.float32)

    # LayerNorm over D with one-pass statistics: sum(y) and sum(y*y) are
    # independent XLU reductions; var = E[y^2] - mean^2 (clamped to guard
    # against tiny negative values from cancellation).  All f32.
    d_inv = 1.0 / y.shape[-1]
    s1 = jnp.sum(y, axis=-1, keepdims=True)
    s2 = jnp.sum(y * y, axis=-1, keepdims=True)
    mean = s1 * d_inv
    var = jnp.maximum(s2 * d_inv - mean * mean, 0.0)
    inv_std = jax.lax.rsqrt(var + 1e-5)          # PyTorch LayerNorm default eps
    o_ref[...] = (y - mean) * inv_std * gamma_ref[...] + beta_ref[...]


def _choose_tile_b(B, max_tile=512):
    """Batch tile: multiple of 8 sublanes.  Large batches get 512-row tiles
    (multiple of both 128 (v5e MXU M) and 256 (v6e/v7x MXU M)); small batches
    get one padded tile.  512 rows double-buffered stays well inside v7x's
    64 MiB VMEM at these K/D."""
    b_pad = -(-B // 8) * 8
    return b_pad if b_pad <= max_tile else max_tile


def item_context(x, w, gamma, beta, *, tile_b=None, matmul_dtype=None):
    """x: (B, K); w: (K, D); gamma, beta: (D,). Returns LayerNorm(x @ w), f32.

    matmul_dtype=jnp.bfloat16 halves x/w HBM + VMEM traffic and feeds the MXU
    at native bf16 rate on v6e/v7x; accumulation and LayerNorm stay in f32."""
    B, K = x.shape
    K2, D = w.shape
    assert K == K2
    assert D % 128 == 0, "keep the output/LayerNorm dim lane-dense"

    if tile_b is None:
        tile_b = _choose_tile_b(B)
    assert tile_b % 8 == 0, "tile_b must be a multiple of 8 sublanes"

    in_dt = matmul_dtype if matmul_dtype is not None else jnp.float32
    xd = x.astype(in_dt)
    wd = w.astype(in_dt)
    gamma2 = gamma.reshape(1, D).astype(jnp.float32)
    beta2 = beta.reshape(1, D).astype(jnp.float32)

    grid = (pl.cdiv(B, tile_b),)
    in_bytes = jnp.dtype(in_dt).itemsize

    # Explicit VMEM budget: double-buffered x/out tiles + resident params,
    # generous headroom, capped at v7x's 64 MiB physical VMEM.
    tile_bytes = (2 * tile_b * K * in_bytes + 2 * tile_b * D * 4
                  + 2 * (K * D * in_bytes + 2 * D * 4))
    vmem_limit = int(min(max(4 * tile_bytes + (1 << 20), 16 << 20), 64 << 20))

    cost = pl.CostEstimate(
        flops=2 * B * K * D,
        transcendentals=B,                         # one rsqrt per row
        bytes_accessed=(B * K * in_bytes + K * D * in_bytes
                        + 2 * D * 4 + B * D * 4),
    )

    # NOTE: w/gamma/beta are grid-invariant (constant index_map); at small
    # K, D=128 their double-buffered footprint is ~20 KB, so default
    # buffering is fine.  Single-buffering them only matters if D grows.
    return pl.pallas_call(
        _item_context_kernel,
        out_shape=jax.ShapeDtypeStruct((B, D), jnp.float32),
        grid_spec=pltpu.PrefetchScalarGridSpec(
            num_scalar_prefetch=0,
            grid=grid,
            in_specs=[
                pl.BlockSpec((tile_b, K), lambda i: (i, 0)),   # x batch tile
                pl.BlockSpec((K, D), lambda i: (0, 0)),        # full weight
                pl.BlockSpec((1, D), lambda i: (0, 0)),        # gamma
                pl.BlockSpec((1, D), lambda i: (0, 0)),        # beta
            ],
            out_specs=pl.BlockSpec((tile_b, D), lambda i: (i, 0)),
        ),
        compiler_params=pltpu.CompilerParams(
            dimension_semantics=("parallel",),   # batch blocks shard across TCs (v7x)
            vmem_limit_bytes=vmem_limit,
        ),
        cost_estimate=cost,
    )(xd, wd, gamma2, beta2)


def reference(x, w, gamma, beta, eps=1e-5):
    y = x @ w
    mean = jnp.mean(y, axis=-1, keepdims=True)
    var = jnp.mean((y - mean) ** 2, axis=-1, keepdims=True)
    return (y - mean) * jax.lax.rsqrt(var + eps) * gamma + beta


if __name__ == "__main__":
    key = jax.random.PRNGKey(0)
    k_x, k_w = jax.random.split(key)

    # Module hyper-params (small, consistent with the forward):
    num_embeddings = 16   # K: input feature dim (x columns)
    embedding_dim = 128   # D: output / LayerNorm dim (lane-dense)
    batch = 64            # B: rows of x

    x = jax.random.normal(k_x, (batch, num_embeddings), dtype=jnp.float32)
    # embedding_matrix ~ xavier_normal: std = sqrt(2 / (fan_in + fan_out))
    std = (2.0 / (num_embeddings + embedding_dim)) ** 0.5
    w = std * jax.random.normal(k_w, (num_embeddings, embedding_dim),
                                dtype=jnp.float32)
    # LayerNorm: weight=1, bias=0 (PyTorch default init)
    gamma = jnp.ones((embedding_dim,), dtype=jnp.float32)
    beta = jnp.zeros((embedding_dim,), dtype=jnp.float32)

    ref = reference(x, w, gamma, beta)

    # 1) f32 path (exact module semantics), single large batch tile.
    out = jax.block_until_ready(item_context(x, w, gamma, beta))
    assert out.shape == (batch, embedding_dim)
    assert jnp.allclose(out, ref, atol=1e-4, rtol=1e-4), "f32 mismatch vs reference"

    # 2) bf16-matmul path (v6e/v7x bandwidth optimization), multi-block grid.
    out_bf16 = jax.block_until_ready(
        item_context(x, w, gamma, beta, tile_b=16, matmul_dtype=jnp.bfloat16))
    assert out_bf16.shape == (batch, embedding_dim)
    assert jnp.allclose(out_bf16, ref, atol=5e-2, rtol=5e-2), "bf16 mismatch vs reference"

    print("KERNEL_OK")
</pallas_src>

<mosaic_0001>
module attributes {stable_mosaic.version = 11 : i64} {
  func.func @_item_context_kernel(%arg0: i32, %arg1: memref<64x16xf32, #tpu.memory_space<vmem>>, %arg2: memref<16x128xf32, #tpu.memory_space<vmem>>, %arg3: memref<1x128xf32, #tpu.memory_space<vmem>>, %arg4: memref<1x128xf32, #tpu.memory_space<vmem>>, %arg5: memref<64x128xf32, #tpu.memory_space<vmem>>) attributes {dimension_semantics = [#tpu.dimension_semantics<parallel>], iteration_bounds = array<i64: 1>, scalar_prefetch = 0 : i64, scratch_operands = 0 : i64, tpu.core_type = #tpu.core_type<tc>, window_params = [{transform_indices = @transform_0, window_bounds = array<i64: 64, 16>}, {pipeline_mode = #tpu.pipeline_mode<synchronous>, transform_indices = @transform_1, window_bounds = array<i64: 16, 128>}, {pipeline_mode = #tpu.pipeline_mode<synchronous>, transform_indices = @transform_2, window_bounds = array<i64: 1, 128>}, {pipeline_mode = #tpu.pipeline_mode<synchronous>, transform_indices = @transform_3, window_bounds = array<i64: 1, 128>}, {transform_indices = @transform_4, window_bounds = array<i64: 64, 128>}]} {
    %c0 = arith.constant 0 : index
    %c0_0 = arith.constant 0 : index
    %0 = vector.load %arg1[%c0, %c0_0] : memref<64x16xf32, #tpu.memory_space<vmem>>, vector<64x16xf32>
    %c0_1 = arith.constant 0 : index
    %c0_2 = arith.constant 0 : index
    %1 = vector.load %arg2[%c0_1, %c0_2] : memref<16x128xf32, #tpu.memory_space<vmem>>, vector<16x128xf32>
    %cst = arith.constant dense<0.000000e+00> : vector<64x128xf32>
    %2 = tpu.matmul %0, %1, %cst {dimension_numbers = #tpu.dot_dimension_numbers<[1], [0], [0], [1], [0, 0, 1, 1], [], []>} : vector<64x16xf32>, vector<16x128xf32>, vector<64x128xf32> -> vector<64x128xf32>
    %cst_3 = arith.constant dense<0.000000e+00> : vector<64xf32>
    %3 = vector.multi_reduction <add>, %2, %cst_3 [1] : vector<64x128xf32> to vector<64xf32>
    %4 = vector.shape_cast %3 : vector<64xf32> to vector<64x1xf32>
    %5 = arith.mulf %2, %2 : vector<64x128xf32>
    %cst_4 = arith.constant dense<0.000000e+00> : vector<64xf32>
    %6 = vector.multi_reduction <add>, %5, %cst_4 [1] : vector<64x128xf32> to vector<64xf32>
    %7 = vector.shape_cast %6 : vector<64xf32> to vector<64x1xf32>
    %cst_5 = arith.constant 7.812500e-03 : f32
    %8 = vector.broadcast %cst_5 : f32 to vector<64x1xf32>
    %9 = arith.mulf %4, %8 : vector<64x1xf32>
    %cst_6 = arith.constant 7.812500e-03 : f32
    %10 = vector.broadcast %cst_6 : f32 to vector<64x1xf32>
    %11 = arith.mulf %7, %10 : vector<64x1xf32>
    %12 = arith.mulf %9, %9 : vector<64x1xf32>
    %13 = arith.subf %11, %12 : vector<64x1xf32>
    %cst_7 = arith.constant 0.000000e+00 : f32
    %14 = vector.broadcast %cst_7 : f32 to vector<64x1xf32>
    %15 = arith.maximumf %13, %14 : vector<64x1xf32>
    %cst_8 = arith.constant 9.99999974E-6 : f32
    %16 = vector.broadcast %cst_8 : f32 to vector<64x1xf32>
    %17 = arith.addf %15, %16 : vector<64x1xf32>
    %18 = math.rsqrt %17 : vector<64x1xf32>
    %19 = vector.broadcast %9 : vector<64x1xf32> to vector<64x128xf32>
    %20 = arith.subf %2, %19 : vector<64x128xf32>
    %21 = vector.broadcast %18 : vector<64x1xf32> to vector<64x128xf32>
    %22 = arith.mulf %20, %21 : vector<64x128xf32>
    %c0_9 = arith.constant 0 : index
    %c0_10 = arith.constant 0 : index
    %23 = vector.load %arg3[%c0_9, %c0_10] : memref<1x128xf32, #tpu.memory_space<vmem>>, vector<1x128xf32>
    %24 = vector.broadcast %23 : vector<1x128xf32> to vector<64x128xf32>
    %25 = arith.mulf %22, %24 : vector<64x128xf32>
    %c0_11 = arith.constant 0 : index
    %c0_12 = arith.constant 0 : index
    %26 = vector.load %arg4[%c0_11, %c0_12] : memref<1x128xf32, #tpu.memory_space<vmem>>, vector<1x128xf32>
    %27 = vector.broadcast %26 : vector<1x128xf32> to vector<64x128xf32>
    %28 = arith.addf %25, %27 : vector<64x128xf32>
    %c0_13 = arith.constant 0 : index
    %c0_14 = arith.constant 0 : index
    %29 = vector.load %arg5[%c0_13, %c0_14] : memref<64x128xf32, #tpu.memory_space<vmem>>, vector<64x128xf32>
    tpu.vector_store %arg5[%c0_13, %c0_14], %28 {strides = array<i32>} : memref<64x128xf32, #tpu.memory_space<vmem>>, vector<64x128xf32>,
    return
  }
  func.func @transform_0(%arg0: i32) -> (i32, i32) {
    %c0_i32 = arith.constant 0 : i32
    %c0_i32_0 = arith.constant 0 : i32
    return %arg0, %c0_i32 : i32, i32
  }
  func.func @transform_1(%arg0: i32) -> (i32, i32) {
    %c0_i32 = arith.constant 0 : i32
    %c0_i32_0 = arith.constant 0 : i32
    %c0_i32_1 = arith.constant 0 : i32
    return %c0_i32, %c0_i32_0 : i32, i32
  }
  func.func @transform_2(%arg0: i32) -> (i32, i32) {
    %c0_i32 = arith.constant 0 : i32
    %c0_i32_0 = arith.constant 0 : i32
    %c0_i32_1 = arith.constant 0 : i32
    return %c0_i32, %c0_i32_0 : i32, i32
  }
  func.func @transform_3(%arg0: i32) -> (i32, i32) {
    %c0_i32 = arith.constant 0 : i32
    %c0_i32_0 = arith.constant 0 : i32
    %c0_i32_1 = arith.constant 0 : i32
    return %c0_i32, %c0_i32_0 : i32, i32
  }
  func.func @transform_4(%arg0: i32) -> (i32, i32) {
    %c0_i32 = arith.constant 0 : i32
    %c0_i32_0 = arith.constant 0 : i32
    return %arg0, %c0_i32 : i32, i32
  }
}

</mosaic_0001>

<llo_original>
// kernel: tpu_custom_call.1
$region0: #{tpu_custom_call.1}
  #allocation0 [shape = 'u32[]', space=smem, size = 0x4, offset = 0x4, fixed_abs, tag = 'smem constant byte address 0x4 - core index']
  #allocation1 [shape = 'u32[72,128]{1,0:T(1,128)}', space=vmem, size = 0x9000, scoped, tag = 'internal scratch']
  %s0 = inlined_call_operand.vmem [shape: f32[64,16], index: 0, kind: input, shape index: {}]
  %s1 = inlined_call_operand.vmem [shape: f32[16,128], index: 1, kind: input, shape index: {}]
  %s2 = inlined_call_operand.vmem [shape: f32[1,128], index: 2, kind: input, shape index: {}]
  %s3 = inlined_call_operand.vmem [shape: f32[1,128], index: 3, kind: input, shape index: {}]
  %s4 = inlined_call_operand.hbm [shape: f32[64,128], index: 4, kind: output, shape index: {}]
  %s5 = sld [smem:[#allocation0]]
  $region26: #{tpu_custom_call.1} parent=0
    _
  %s7 = ssub.s32 1, %s5
  %s8 = scalar_select 0, %s7, %s5
  $region1: #{tpu_custom_call.1} parent=0
    #allocation2 [shape = 'u8[32768]{0}', space=vmem, size = 0x8000, scoped, tag = 'output window, operand 0, single buffered']
    #allocation3 [shape = 's32[1]{0}', space=sflag, size = 0x4, scoped, tag = 'scoped memory for tpu_custom_call.1']
    %9 = vsyncpa [#allocation3], 0
    // Predicated region
    $region2: #{tpu_custom_call.1} parent=1 // pred_check
      _
    $region3: #{tpu_custom_call.1} parent=1 // pred_check_branch
      %11 = sbr.rel (0) target = $region5
    $region4: #{tpu_custom_call.1} parent=1 // pred_region
      _
    $region5: #{tpu_custom_call.1} parent=1 // pred_fallthru
      _
    // Predicated region
    $region6: #{tpu_custom_call.1} parent=1 // pred_check
      _
    $region7: #{tpu_custom_call.1} parent=1 // pred_check_branch
      %13 = sbr.rel (0) target = $region9
    $region8: #{tpu_custom_call.1} parent=1 // pred_region
      _
    $region9: #{tpu_custom_call.1} parent=1 // pred_fallthru
      _
    // Predicated region
    $region10: #{tpu_custom_call.1} parent=1 // pred_check
      _
    $region11: #{tpu_custom_call.1} parent=1 // pred_check_branch
      %15 = sbr.rel (0) target = $region13
    $region12: #{tpu_custom_call.1} parent=1 // pred_region
      _
    $region13: #{tpu_custom_call.1} parent=1 // pred_fallthru
      _
    // Predicated region
    $region14: #{tpu_custom_call.1} parent=1 // pred_check
      _
    $region15: #{tpu_custom_call.1} parent=1 // pred_check_branch
      %17 = sbr.rel (0) target = $region17
    $region16: #{tpu_custom_call.1} parent=1 // pred_region
      _
    $region17: #{tpu_custom_call.1} parent=1 // pred_fallthru
      _
    %v18 = vld [vmem:[%s0] sm:$0xff]
    %v19 = vld [vmem:[%s0 + $0x8] sm:$0xff]
    %v20 = vld [vmem:[%s0 + $0x10] sm:$0xff]
    %v21 = vld [vmem:[%s0 + $0x18] sm:$0xff]
    %v22 = vld [vmem:[%s0 + $0x20] sm:$0xff]
    %v23 = vld [vmem:[%s0 + $0x28] sm:$0xff]
    %v24 = vld [vmem:[%s0 + $0x30] sm:$0xff]
    %v25 = vld [vmem:[%s0 + $0x38] sm:$0xff]
    %v26 = vld [vmem:[%s1] sm:$0xff]
    %v27 = vld [vmem:[%s1 + $0x8] sm:$0xff]
    %vm28 = vcmask 130048
    %v30 = vsel %vm28, %v18, 0
    %v33 = vsel %vm28, %v19, 0
    %v36 = vsel %vm28, %v20, 0
    %v39 = vsel %vm28, %v21, 0
    %v42 = vsel %vm28, %v22, 0
    %v45 = vsel %vm28, %v23, 0
    %v48 = vsel %vm28, %v24, 0
    %v51 = vsel %vm28, %v25, 0
    %53 = vmatpush.msra.mxu0 0.0
    %54 = vmatpush.msra.mxu0 0.0
    %55 = vmatpush.msra.mxu0 0.0
    %56 = vmatpush.msra.mxu0 0.0
    %57 = vmatpush.msra.mxu0 0.0
    %58 = vmatpush.msra.mxu0 0.0
    %59 = vmatpush.msra.mxu0 0.0
    %60 = vmatpush.msra.mxu0 0.0
    %61 = vmatpush.msra.mxu0 0.0
    %62 = vmatpush.msra.mxu0 0.0
    %63 = vmatpush.msra.mxu0 0.0
    %64 = vmatpush.msra.mxu0 0.0
    %65 = vmatpush.msra.mxu0 0.0
    %66 = vmatpush.msra.mxu0 0.0
    %67 = vmatpush.msra.mxu0 %v27
    %68 = vmatpush.msra.mxu0 %v26
    %69 = vmatmul.f32.gmra.mxu0 %v30
    %v70 = vpop.f32.mrf.mxu0
    %v71 = vadd.f32 0.0, %v70
    %72 = vmatmul.f32.gmra.mxu0 %v33
    %v73 = vpop.f32.mrf.mxu0
    %v74 = vadd.f32 0.0, %v73
    %75 = vmatmul.f32.gmra.mxu0 %v36
    %v76 = vpop.f32.mrf.mxu0
    %v77 = vadd.f32 0.0, %v76
    %78 = vmatmul.f32.gmra.mxu0 %v39
    %v79 = vpop.f32.mrf.mxu0
    %v80 = vadd.f32 0.0, %v79
    %81 = vmatmul.f32.gmra.mxu0 %v42
    %v82 = vpop.f32.mrf.mxu0
    %v83 = vadd.f32 0.0, %v82
    %84 = vmatmul.f32.gmra.mxu0 %v45
    %v85 = vpop.f32.mrf.mxu0
    %v86 = vadd.f32 0.0, %v85
    %87 = vmatmul.f32.gmra.mxu0 %v48
    %v88 = vpop.f32.mrf.mxu0
    %v89 = vadd.f32 0.0, %v88
    %90 = vmatmul.f32.gmra.mxu0 %v51
    %v91 = vpop.f32.mrf.mxu0
    %v92 = vadd.f32 0.0, %v91
    %93 = vdwg.mxu0
    %94 = vadd.xlane.f32.xlu0 %v71
    %v95 = vpop.xlane.xlu0 %94
    %96 = vadd.xlane.f32.xlu0 %v74
    %v97 = vpop.xlane.xlu0 %96
    %98 = vadd.xlane.f32.xlu0 %v77
    %v99 = vpop.xlane.xlu0 %98
    %100 = vadd.xlane.f32.xlu0 %v80
    %v101 = vpop.xlane.xlu0 %100
    %102 = vadd.xlane.f32.xlu0 %v83
    %v103 = vpop.xlane.xlu0 %102
    %104 = vadd.xlane.f32.xlu0 %v86
    %v105 = vpop.xlane.xlu0 %104
    %106 = vadd.xlane.f32.xlu0 %v89
    %v107 = vpop.xlane.xlu0 %106
    %108 = vadd.xlane.f32.xlu0 %v92
    %v109 = vpop.xlane.xlu0 %108
    %v110 = vmul.f32 %v71, %v71
    %v111 = vmul.f32 %v74, %v74
    %v112 = vmul.f32 %v77, %v77
    %v113 = vmul.f32 %v80, %v80
    %v114 = vmul.f32 %v83, %v83
    %v115 = vmul.f32 %v86, %v86
    %v116 = vmul.f32 %v89, %v89
    %v117 = vmul.f32 %v92, %v92
    %118 = vadd.xlane.f32.xlu0 %v110
    %v119 = vpop.xlane.xlu0 %118
    %120 = vadd.xlane.f32.xlu0 %v111
    %v121 = vpop.xlane.xlu0 %120
    %122 = vadd.xlane.f32.xlu0 %v112
    %v123 = vpop.xlane.xlu0 %122
    %124 = vadd.xlane.f32.xlu0 %v113
    %v125 = vpop.xlane.xlu0 %124
    %126 = vadd.xlane.f32.xlu0 %v114
    %v127 = vpop.xlane.xlu0 %126
    %128 = vadd.xlane.f32.xlu0 %v115
    %v129 = vpop.xlane.xlu0 %128
    %130 = vadd.xlane.f32.xlu0 %v116
    %v131 = vpop.xlane.xlu0 %130
    %132 = vadd.xlane.f32.xlu0 %v117
    %v133 = vpop.xlane.xlu0 %132
    %v134 = vmul.f32 %v95, 0.0078125
    %v135 = vmul.f32 %v97, 0.0078125
    %v136 = vmul.f32 %v99, 0.0078125
    %v137 = vmul.f32 %v101, 0.0078125
    %v138 = vmul.f32 %v103, 0.0078125
    %v139 = vmul.f32 %v105, 0.0078125
    %v140 = vmul.f32 %v107, 0.0078125
    %v141 = vmul.f32 %v109, 0.0078125
    %v142 = vmul.f32 %v119, 0.0078125
    %v143 = vmul.f32 %v121, 0.0078125
    %v144 = vmul.f32 %v123, 0.0078125
    %v145 = vmul.f32 %v125, 0.0078125
    %v146 = vmul.f32 %v127, 0.0078125
    %v147 = vmul.f32 %v129, 0.0078125
    %v148 = vmul.f32 %v131, 0.0078125
    %v149 = vmul.f32 %v133, 0.0078125
    %v150 = vmul.f32 %v134, %v134
    %v151 = vmul.f32 %v135, %v135
    %v152 = vmul.f32 %v136, %v136
    %v153 = vmul.f32 %v137, %v137
    %v154 = vmul.f32 %v138, %v138
    %v155 = vmul.f32 %v139, %v139
    %v156 = vmul.f32 %v140, %v140
    %v157 = vmul.f32 %v141, %v141
    %v158 = vsub.f32 %v142, %v150
    %v159 = vsub.f32 %v143, %v151
    %v160 = vsub.f32 %v144, %v152
    %v161 = vsub.f32 %v145, %v153
    %v162 = vsub.f32 %v146, %v154
    %v163 = vsub.f32 %v147, %v155
    %v164 = vsub.f32 %v148, %v156
    %v165 = vsub.f32 %v149, %v157
    %v166 = vmax.f32 %v158, 0.0
    %v167 = vmax.f32 %v159, 0.0
    %v168 = vmax.f32 %v160, 0.0
    %v169 = vmax.f32 %v161, 0.0
    %v170 = vmax.f32 %v162, 0.0
    %v171 = vmax.f32 %v163, 0.0
    %v172 = vmax.f32 %v164, 0.0
    %v173 = vmax.f32 %v165, 0.0
    %v174 = vadd.f32 %v166, 1e-05
    %v175 = vadd.f32 %v167, 1e-05
    %v176 = vadd.f32 %v168, 1e-05
    %v177 = vadd.f32 %v169, 1e-05
    %v178 = vadd.f32 %v170, 1e-05
    %v179 = vadd.f32 %v171, 1e-05
    %v180 = vadd.f32 %v172, 1e-05
    %v181 = vadd.f32 %v173, 1e-05
    %v182 = vrsqrt.pop %v174
    %v183 = vmul.f32 %v182, %v174
    %v184 = vmul.f32 %v183, %v182
    %v185 = vmul.f32 0.5, %v184
    %v186 = vsub.f32 1.5, %v185
    %v187 = vmul.f32 %v182, %v186
    %vm188 = vweird.f32 %v174
    %vm189 = vweird.f32 %v182
    %vm190 = vmor %vm188, %vm189
    %v191 = vsel %vm190, %v182, %v187
    %v192 = vrsqrt.pop %v175
    %v193 = vmul.f32 %v192, %v175
    %v194 = vmul.f32 %v193, %v192
    %v195 = vmul.f32 0.5, %v194
    %v196 = vsub.f32 1.5, %v195
    %v197 = vmul.f32 %v192, %v196
    %vm198 = vweird.f32 %v175
    %vm199 = vweird.f32 %v192
    %vm200 = vmor %vm198, %vm199
    %v201 = vsel %vm200, %v192, %v197
    %v202 = vrsqrt.pop %v176
    %v203 = vmul.f32 %v202, %v176
    %v204 = vmul.f32 %v203, %v202
    %v205 = vmul.f32 0.5, %v204
    %v206 = vsub.f32 1.5, %v205
    %v207 = vmul.f32 %v202, %v206
    %vm208 = vweird.f32 %v176
    %vm209 = vweird.f32 %v202
    %vm210 = vmor %vm208, %vm209
    %v211 = vsel %vm210, %v202, %v207
    %v212 = vrsqrt.pop %v177
    %v213 = vmul.f32 %v212, %v177
    %v214 = vmul.f32 %v213, %v212
    %v215 = vmul.f32 0.5, %v214
    %v216 = vsub.f32 1.5, %v215
    %v217 = vmul.f32 %v212, %v216
    %vm218 = vweird.f32 %v177
    %vm219 = vweird.f32 %v212
    %vm220 = vmor %vm218, %vm219
    %v221 = vsel %vm220, %v212, %v217
    %v222 = vrsqrt.pop %v178
    %v223 = vmul.f32 %v222, %v178
    %v224 = vmul.f32 %v223, %v222
    %v225 = vmul.f32 0.5, %v224
    %v226 = vsub.f32 1.5, %v225
    %v227 = vmul.f32 %v222, %v226
    %vm228 = vweird.f32 %v178
    %vm229 = vweird.f32 %v222
    %vm230 = vmor %vm228, %vm229
    %v231 = vsel %vm230, %v222, %v227
    %v232 = vrsqrt.pop %v179
    %v233 = vmul.f32 %v232, %v179
    %v234 = vmul.f32 %v233, %v232
    %v235 = vmul.f32 0.5, %v234
    %v236 = vsub.f32 1.5, %v235
    %v237 = vmul.f32 %v232, %v236
    %vm238 = vweird.f32 %v179
    %vm239 = vweird.f32 %v232
    %vm240 = vmor %vm238, %vm239
    %v241 = vsel %vm240, %v232, %v237
    %v242 = vrsqrt.pop %v180
    %v243 = vmul.f32 %v242, %v180
    %v244 = vmul.f32 %v243, %v242
    %v245 = vmul.f32 0.5, %v244
    %v246 = vsub.f32 1.5, %v245
    %v247 = vmul.f32 %v242, %v246
    %vm248 = vweird.f32 %v180
    %vm249 = vweird.f32 %v242
    %vm250 = vmor %vm248, %vm249
    %v251 = vsel %vm250, %v242, %v247
    %v252 = vrsqrt.pop %v181
    %v253 = vmul.f32 %v252, %v181
    %v254 = vmul.f32 %v253, %v252
    %v255 = vmul.f32 0.5, %v254
    %v256 = vsub.f32 1.5, %v255
    %v257 = vmul.f32 %v252, %v256
    %vm258 = vweird.f32 %v181
    %vm259 = vweird.f32 %v252
    %vm260 = vmor %vm258, %vm259
    %v261 = vsel %vm260, %v252, %v257
    %v262 = vsub.f32 %v71, %v134
    %v263 = vsub.f32 %v74, %v135
    %v264 = vsub.f32 %v77, %v136
    %v265 = vsub.f32 %v80, %v137
    %v266 = vsub.f32 %v83, %v138
    %v267 = vsub.f32 %v86, %v139
    %v268 = vsub.f32 %v89, %v140
    %v269 = vsub.f32 %v92, %v141
    %v270 = vmul.f32 %v262, %v191
    %v271 = vmul.f32 %v263, %v201
    %v272 = vmul.f32 %v264, %v211
    %v273 = vmul.f32 %v265, %v221
    %v274 = vmul.f32 %v266, %v231
    %v275 = vmul.f32 %v267, %v241
    %v276 = vmul.f32 %v268, %v251
    %v277 = vmul.f32 %v269, %v261
    %v278 = vld [vmem:[%s2] sm:$0x1]
    %v280 = vperm.slane %v278, 0
    %v282 = vmul.f32 %v270, %v280
    %v283 = vmul.f32 %v271, %v280
    %v284 = vmul.f32 %v272, %v280
    %v285 = vmul.f32 %v273, %v280
    %v286 = vmul.f32 %v274, %v280
    %v287 = vmul.f32 %v275, %v280
    %v288 = vmul.f32 %v276, %v280
    %v289 = vmul.f32 %v277, %v280
    %v290 = vld [vmem:[%s3] sm:$0x1]
    %v292 = vperm.slane %v290, 0
    %v294 = vadd.f32 %v282, %v292
    %v295 = vadd.f32 %v283, %v292
    %v296 = vadd.f32 %v284, %v292
    %v297 = vadd.f32 %v285, %v292
    %v298 = vadd.f32 %v286, %v292
    %v299 = vadd.f32 %v287, %v292
    %v300 = vadd.f32 %v288, %v292
    %v301 = vadd.f32 %v289, %v292
    %302 = vst [vmem:[#allocation2] sm:$0xff] %v294
    %303 = vst [vmem:[#allocation2 + $0x8] sm:$0xff] %v295
    %304 = vst [vmem:[#allocation2 + $0x10] sm:$0xff] %v296
    %305 = vst [vmem:[#allocation2 + $0x18] sm:$0xff] %v297
    %306 = vst [vmem:[#allocation2 + $0x20] sm:$0xff] %v298
    %307 = vst [vmem:[#allocation2 + $0x28] sm:$0xff] %v299
    %308 = vst [vmem:[#allocation2 + $0x30] sm:$0xff] %v300
    %309 = vst [vmem:[#allocation2 + $0x38] sm:$0xff] %v301
    // Predicated region
    $region18: #{tpu_custom_call.1} parent=1 // pred_check
      _
    $region19: #{tpu_custom_call.1} parent=1 // pred_check_branch
      %311 = sbr.rel (0) target = $region21
    $region20: #{tpu_custom_call.1} parent=1 // pred_region
      %313 = vsyncadd [#allocation3], 0
      %s314 = sshll.u32 [#allocation2], 4
      %s315 = int_to_ptr.vmem [resolvable:$true] %s314
      %s316 = sshll.u32 %s4, 4
      %s317 = int_to_ptr.hbm [resolvable:$true] %s316
      %322 = dma.vmem_to_hbm [thread:$0]  %s315, 1024, %s317, [#allocation3], 128, 128, 8
    $region21: #{tpu_custom_call.1} parent=1 // pred_fallthru
      _
    // Predicated region
    $region22: #{tpu_custom_call.1} parent=1 // pred_check
      _
    $region23: #{tpu_custom_call.1} parent=1 // pred_check_branch
      %324 = sbr.rel (0) target = $region25
    $region24: #{tpu_custom_call.1} parent=1 // pred_region
      %326 = dma.done [#allocation3], 1024
    $region25: #{tpu_custom_call.1} parent=1 // pred_fallthru
      _
    %327 = vsyncpa [#allocation3], 1

</llo_original>
